<compile_context>
chip_gen: v7x
topology: tpu7x:2x2x1
jax: 0.10.0
libtpu: 0.0.40
codegen_flags: <defaults>
</compile_context>

<pallas_src>
import functools

import jax
import jax.numpy as jnp
import numpy as np
from jax import lax
from jax.experimental import pallas as pl
from jax.experimental.pallas import tpu as pltpu

EPS = 1e-5
K = 3          # kernel_size (padding = K // 2 = 1)


def _round_up(x, m):
    return (x + m - 1) // m * m


def _instancenorm_relu(y):
    """y: (Cp, H*W) f32. Per-channel (row) norm over spatial lanes + ReLU."""
    mean = jnp.mean(y, axis=1, keepdims=True)
    d = y - mean
    var = jnp.mean(d * d, axis=1, keepdims=True)
    return jnp.maximum(d * lax.rsqrt(var + EPS), 0.0)


def _conv3x3(x_op, w_ref, b_ref, m_ref, *, H, W, CP):
    """3x3 'same' conv in channel-major, flattened-spatial form.

    x_op : (Cin, H*W)   bf16  (channels on sublanes, spatial on lanes)
    w_ref: (9*CP, Cin)  bf16  rows ordered (tap, c_out); one fused MXU matmul
    b_ref: (CP, 1)      f32   bias (zero-padded rows beyond the real C)
    m_ref: (9, 1, H*W)  f32   per-tap border masks (the conv zero padding)
    returns (CP, H*W) f32
    """
    HW = H * W
    # One matmul gives, for every tap t and output channel co, the per-pixel
    # contribution of the *unshifted* image:
    #   t_all[t*CP + co, p] = sum_ci w_t[co, ci] * x[ci, p]
    t_all = jnp.dot(w_ref[...], x_op, preferred_element_type=jnp.float32)  # (9*CP, HW)

    acc = None
    for t in range(9):
        kh, kw = t // 3, t % 3
        dh, dw = kh - 1, kw - 1
        blk = t_all[t * CP:(t + 1) * CP, :]          # aligned sublane slice (CP, HW)
        s = dh * W + dw                              # flat spatial offset of this tap
        if s != 0:
            # output pixel p needs t_all[:, p + s]: circular lane roll, then the
            # border mask zeroes the wrapped / out-of-image positions (XLU+VPU).
            blk = pltpu.roll(blk, (-s) % HW, 1)
            blk = blk * m_ref[t]                     # (1, HW) broadcast over channels
        acc = blk if acc is None else acc + blk
    return acc + b_ref[...]


def residual_block_kernel(x_ref, m_ref, w1_ref, b1_ref, w2_ref, b2_ref,
                          out_ref, *, H, W, CP):
    # x_ref / out_ref: (C, H*W) for one image (batch dim squeezed by BlockSpec).
    xb = x_ref[...].astype(jnp.bfloat16)

    # BasicBlock 1: conv3x3 -> InstanceNorm -> ReLU (padded rows >= C stay 0).
    y = _instancenorm_relu(_conv3x3(xb, w1_ref, b1_ref, m_ref, H=H, W=W, CP=CP))

    # BasicBlock 2 (input is the CP-row intermediate; padded rows are zero).
    y = _instancenorm_relu(
        _conv3x3(y.astype(jnp.bfloat16), w2_ref, b2_ref, m_ref, H=H, W=W, CP=CP))

    # Residual connection: re-read x_ref here instead of keeping it live in f32
    # across both blocks (reduces vreg/VMEM live-range pressure).
    C = out_ref.shape[0]
    out_ref[...] = (x_ref[...] + y[:C, :]).astype(out_ref.dtype)


def _pack_weights(w, cin_pad, cp):
    """w: (C_out, C_in, 3, 3) torch layout -> (9*cp, cin_pad), rows = (tap, c_out)."""
    c_out, c_in, k, _ = w.shape
    wt = jnp.transpose(w, (2, 3, 0, 1)).reshape(k * k, c_out, c_in)   # (t, co, ci)
    wt = jnp.pad(wt, ((0, 0), (0, cp - c_out), (0, cin_pad - c_in)))
    return wt.reshape(k * k * cp, cin_pad)


def _border_masks(H, W):
    """(9, 1, H*W) f32: 1 where the shifted pixel lies inside the image."""
    hh = jnp.arange(H).reshape(H, 1)
    ww = jnp.arange(W).reshape(1, W)
    ms = []
    for kh in range(K):
        for kw in range(K):
            dh, dw = kh - 1, kw - 1
            valid = (hh + dh >= 0) & (hh + dh < H) & (ww + dw >= 0) & (ww + dw < W)
            ms.append(valid.astype(jnp.float32).reshape(1, H * W))
    return jnp.stack(ms, axis=0)


def residual_block(x_nchw, w1, b1, w2, b2):
    N, C, H, W = x_nchw.shape
    HW = H * W
    CP = _round_up(C, 8)          # pad channel rows to the sublane tile

    # Free reshapes only: HBM layout stays plain NCHW (no transpose, no pad).
    x2d = x_nchw.reshape(N, C, HW)
    masks = _border_masks(H, W)
    w1p = _pack_weights(w1, C, CP).astype(jnp.bfloat16)    # conv1: Cin = C
    w2p = _pack_weights(w2, CP, CP).astype(jnp.bfloat16)   # conv2: Cin = CP (zero cols)
    b1p = jnp.pad(b1, (0, CP - C)).reshape(CP, 1).astype(jnp.float32)
    b2p = jnp.pad(b2, (0, CP - C)).reshape(CP, 1).astype(jnp.float32)

    kernel = functools.partial(residual_block_kernel, H=H, W=W, CP=CP)

    # TODO(synk): for large C*H*W, strip-tile over H with a 1-row halo so the
    # per-step working set fits v7x's 64 MiB VMEM; whole-image blocks are fine here.
    out = pl.pallas_call(
        kernel,
        out_shape=jax.ShapeDtypeStruct((N, C, HW), x_nchw.dtype),
        grid_spec=pltpu.PrefetchScalarGridSpec(
            num_scalar_prefetch=0,
            grid=(N,),
            in_specs=[
                pl.BlockSpec((None, C, HW), lambda n: (n, 0, 0)),   # x (per image)
                pl.BlockSpec((9, 1, HW), lambda n: (0, 0, 0)),      # border masks
                pl.BlockSpec((9 * CP, C), lambda n: (0, 0)),        # w1 (resident)
                pl.BlockSpec((CP, 1), lambda n: (0, 0)),            # b1
                pl.BlockSpec((9 * CP, CP), lambda n: (0, 0)),       # w2 (resident)
                pl.BlockSpec((CP, 1), lambda n: (0, 0)),            # b2
            ],
            out_specs=pl.BlockSpec((None, C, HW), lambda n: (n, 0, 0)),
        ),
        compiler_params=pltpu.CompilerParams(
            dimension_semantics=("parallel",),
            vmem_limit_bytes=64 * 1024 * 1024,
        ),
    )(x2d, masks, w1p, b1p, w2p, b2p)

    return out.reshape(N, C, H, W)


def _reference(x, w1, b1, w2, b2):
    """Pure-JAX f32 reference (NCHW, OIHW torch-layout weights)."""
    def basic(x, w, b):
        y = lax.conv_general_dilated(
            x, w, window_strides=(1, 1), padding=((1, 1), (1, 1)),
            dimension_numbers=('NCHW', 'OIHW', 'NCHW'))
        y = y + b.reshape(1, -1, 1, 1)
        mean = y.mean(axis=(2, 3), keepdims=True)
        var = ((y - mean) ** 2).mean(axis=(2, 3), keepdims=True)
        return jnp.maximum((y - mean) * lax.rsqrt(var + EPS), 0.0)
    return x + basic(basic(x, w1, b1), w2, b2)


if __name__ == "__main__":
    N, C, H, W = 2, 4, 16, 16
    key = jax.random.PRNGKey(0)
    k0, k1, k2, k3, k4 = jax.random.split(key, 5)

    x = jax.random.normal(k0, (N, C, H, W), jnp.float32)

    # Deterministic PyTorch-like init, weights in torch (C_out, C_in, K, K) layout.
    fan_in = C * K * K
    bound = float(fan_in) ** -0.5
    w1 = jax.random.uniform(k1, (C, C, K, K), jnp.float32, -bound, bound)
    b1 = jax.random.uniform(k2, (C,), jnp.float32, -bound, bound)
    w2 = jax.random.uniform(k3, (C, C, K, K), jnp.float32, -bound, bound)
    b2 = jax.random.uniform(k4, (C,), jnp.float32, -bound, bound)

    out = residual_block(x, w1, b1, w2, b2)
    out = jax.block_until_ready(out)

    ref = _reference(x, w1, b1, w2, b2)
    assert out.shape == x.shape and out.dtype == x.dtype
    # bf16 MXU operands (f32 accumulation, f32 norm/residual) vs. a pure-f32
    # reference -> widened tolerance.
    np.testing.assert_allclose(np.asarray(out), np.asarray(ref), atol=2e-2, rtol=2e-2)

    print("KERNEL_OK")
</pallas_src>

<mosaic_0001>
module attributes {stable_mosaic.version = 11 : i64} {
  func.func @residual_block_kernel(%arg0: i32, %arg1: memref<1x4x256xf32, #tpu.memory_space<vmem>>, %arg2: memref<9x1x256xf32, #tpu.memory_space<vmem>>, %arg3: memref<72x4xbf16, #tpu.memory_space<vmem>>, %arg4: memref<8x1xf32, #tpu.memory_space<vmem>>, %arg5: memref<72x8xbf16, #tpu.memory_space<vmem>>, %arg6: memref<8x1xf32, #tpu.memory_space<vmem>>, %arg7: memref<1x4x256xf32, #tpu.memory_space<vmem>>) attributes {dimension_semantics = [#tpu.dimension_semantics<parallel>], iteration_bounds = array<i64: 2>, scalar_prefetch = 0 : i64, scratch_operands = 0 : i64, tpu.core_type = #tpu.core_type<tc>, window_params = [{transform_indices = @transform_0, window_bounds = array<i64: 1, 4, 256>}, {pipeline_mode = #tpu.pipeline_mode<synchronous>, transform_indices = @transform_1, window_bounds = array<i64: 9, 1, 256>}, {pipeline_mode = #tpu.pipeline_mode<synchronous>, transform_indices = @transform_2, window_bounds = array<i64: 72, 4>}, {pipeline_mode = #tpu.pipeline_mode<synchronous>, transform_indices = @transform_3, window_bounds = array<i64: 8, 1>}, {pipeline_mode = #tpu.pipeline_mode<synchronous>, transform_indices = @transform_4, window_bounds = array<i64: 72, 8>}, {pipeline_mode = #tpu.pipeline_mode<synchronous>, transform_indices = @transform_5, window_bounds = array<i64: 8, 1>}, {transform_indices = @transform_6, window_bounds = array<i64: 1, 4, 256>}]} {
    %c0 = arith.constant 0 : index
    %c0_0 = arith.constant 0 : index
    %c0_1 = arith.constant 0 : index
    %0 = vector.load %arg1[%c0, %c0_0, %c0_1] : memref<1x4x256xf32, #tpu.memory_space<vmem>>, vector<1x4x256xf32>
    %1 = vector.shape_cast %0 : vector<1x4x256xf32> to vector<4x256xf32>
    %2 = arith.truncf %1 : vector<4x256xf32> to vector<4x256xbf16>
    %c0_2 = arith.constant 0 : index
    %c0_3 = arith.constant 0 : index
    %3 = vector.load %arg3[%c0_2, %c0_3] : memref<72x4xbf16, #tpu.memory_space<vmem>>, vector<72x4xbf16>
    %cst = arith.constant dense<0.000000e+00> : vector<72x256xf32>
    %4 = tpu.matmul %3, %2, %cst {dimension_numbers = #tpu.dot_dimension_numbers<[1], [0], [0], [1], [0, 0, 1, 1], [], []>} : vector<72x4xbf16>, vector<4x256xbf16>, vector<72x256xf32> -> vector<72x256xf32>
    %5 = vector.extract_strided_slice %4 {offsets = [0, 0], sizes = [8, 256], strides = [1, 1]} : vector<72x256xf32> to vector<8x256xf32>
    %c17_i32 = arith.constant 17 : i32
    %6 = tpu.dynamic_rotate %5 by %c17_i32 dim 1 : vector<8x256xf32>, i32 -> vector<8x256xf32>
    %c0_4 = arith.constant 0 : index
    %c0_5 = arith.constant 0 : index
    %c0_6 = arith.constant 0 : index
    %7 = vector.load %arg2[%c0_4, %c0_5, %c0_6] : memref<9x1x256xf32, #tpu.memory_space<vmem>>, vector<1x1x256xf32>
    %8 = vector.shape_cast %7 : vector<1x1x256xf32> to vector<1x256xf32>
    %9 = vector.broadcast %8 : vector<1x256xf32> to vector<8x256xf32>
    %10 = arith.mulf %6, %9 : vector<8x256xf32>
    %11 = vector.extract_strided_slice %4 {offsets = [8, 0], sizes = [8, 256], strides = [1, 1]} : vector<72x256xf32> to vector<8x256xf32>
    %c16_i32 = arith.constant 16 : i32
    %12 = tpu.dynamic_rotate %11 by %c16_i32 dim 1 : vector<8x256xf32>, i32 -> vector<8x256xf32>
    %c1 = arith.constant 1 : index
    %c0_7 = arith.constant 0 : index
    %c0_8 = arith.constant 0 : index
    %13 = vector.load %arg2[%c1, %c0_7, %c0_8] : memref<9x1x256xf32, #tpu.memory_space<vmem>>, vector<1x1x256xf32>
    %14 = vector.shape_cast %13 : vector<1x1x256xf32> to vector<1x256xf32>
    %15 = vector.broadcast %14 : vector<1x256xf32> to vector<8x256xf32>
    %16 = arith.mulf %12, %15 : vector<8x256xf32>
    %17 = arith.addf %10, %16 : vector<8x256xf32>
    %18 = vector.extract_strided_slice %4 {offsets = [16, 0], sizes = [8, 256], strides = [1, 1]} : vector<72x256xf32> to vector<8x256xf32>
    %c15_i32 = arith.constant 15 : i32
    %19 = tpu.dynamic_rotate %18 by %c15_i32 dim 1 : vector<8x256xf32>, i32 -> vector<8x256xf32>
    %c2 = arith.constant 2 : index
    %c0_9 = arith.constant 0 : index
    %c0_10 = arith.constant 0 : index
    %20 = vector.load %arg2[%c2, %c0_9, %c0_10] : memref<9x1x256xf32, #tpu.memory_space<vmem>>, vector<1x1x256xf32>
    %21 = vector.shape_cast %20 : vector<1x1x256xf32> to vector<1x256xf32>
    %22 = vector.broadcast %21 : vector<1x256xf32> to vector<8x256xf32>
    %23 = arith.mulf %19, %22 : vector<8x256xf32>
    %24 = arith.addf %17, %23 : vector<8x256xf32>
    %25 = vector.extract_strided_slice %4 {offsets = [24, 0], sizes = [8, 256], strides = [1, 1]} : vector<72x256xf32> to vector<8x256xf32>
    %c1_i32 = arith.constant 1 : i32
    %26 = tpu.dynamic_rotate %25 by %c1_i32 dim 1 : vector<8x256xf32>, i32 -> vector<8x256xf32>
    %c3 = arith.constant 3 : index
    %c0_11 = arith.constant 0 : index
    %c0_12 = arith.constant 0 : index
    %27 = vector.load %arg2[%c3, %c0_11, %c0_12] : memref<9x1x256xf32, #tpu.memory_space<vmem>>, vector<1x1x256xf32>
    %28 = vector.shape_cast %27 : vector<1x1x256xf32> to vector<1x256xf32>
    %29 = vector.broadcast %28 : vector<1x256xf32> to vector<8x256xf32>
    %30 = arith.mulf %26, %29 : vector<8x256xf32>
    %31 = arith.addf %24, %30 : vector<8x256xf32>
    %32 = vector.extract_strided_slice %4 {offsets = [32, 0], sizes = [8, 256], strides = [1, 1]} : vector<72x256xf32> to vector<8x256xf32>
    %33 = arith.addf %31, %32 : vector<8x256xf32>
    %34 = vector.extract_strided_slice %4 {offsets = [40, 0], sizes = [8, 256], strides = [1, 1]} : vector<72x256xf32> to vector<8x256xf32>
    %c255_i32 = arith.constant 255 : i32
    %35 = tpu.dynamic_rotate %34 by %c255_i32 dim 1 : vector<8x256xf32>, i32 -> vector<8x256xf32>
    %c5 = arith.constant 5 : index
    %c0_13 = arith.constant 0 : index
    %c0_14 = arith.constant 0 : index
    %36 = vector.load %arg2[%c5, %c0_13, %c0_14] : memref<9x1x256xf32, #tpu.memory_space<vmem>>, vector<1x1x256xf32>
    %37 = vector.shape_cast %36 : vector<1x1x256xf32> to vector<1x256xf32>
    %38 = vector.broadcast %37 : vector<1x256xf32> to vector<8x256xf32>
    %39 = arith.mulf %35, %38 : vector<8x256xf32>
    %40 = arith.addf %33, %39 : vector<8x256xf32>
    %41 = vector.extract_strided_slice %4 {offsets = [48, 0], sizes = [8, 256], strides = [1, 1]} : vector<72x256xf32> to vector<8x256xf32>
    %c241_i32 = arith.constant 241 : i32
    %42 = tpu.dynamic_rotate %41 by %c241_i32 dim 1 : vector<8x256xf32>, i32 -> vector<8x256xf32>
    %c6 = arith.constant 6 : index
    %c0_15 = arith.constant 0 : index
    %c0_16 = arith.constant 0 : index
    %43 = vector.load %arg2[%c6, %c0_15, %c0_16] : memref<9x1x256xf32, #tpu.memory_space<vmem>>, vector<1x1x256xf32>
    %44 = vector.shape_cast %43 : vector<1x1x256xf32> to vector<1x256xf32>
    %45 = vector.broadcast %44 : vector<1x256xf32> to vector<8x256xf32>
    %46 = arith.mulf %42, %45 : vector<8x256xf32>
    %47 = arith.addf %40, %46 : vector<8x256xf32>
    %48 = vector.extract_strided_slice %4 {offsets = [56, 0], sizes = [8, 256], strides = [1, 1]} : vector<72x256xf32> to vector<8x256xf32>
    %c240_i32 = arith.constant 240 : i32
    %49 = tpu.dynamic_rotate %48 by %c240_i32 dim 1 : vector<8x256xf32>, i32 -> vector<8x256xf32>
    %c7 = arith.constant 7 : index
    %c0_17 = arith.constant 0 : index
    %c0_18 = arith.constant 0 : index
    %50 = vector.load %arg2[%c7, %c0_17, %c0_18] : memref<9x1x256xf32, #tpu.memory_space<vmem>>, vector<1x1x256xf32>
    %51 = vector.shape_cast %50 : vector<1x1x256xf32> to vector<1x256xf32>
    %52 = vector.broadcast %51 : vector<1x256xf32> to vector<8x256xf32>
    %53 = arith.mulf %49, %52 : vector<8x256xf32>
    %54 = arith.addf %47, %53 : vector<8x256xf32>
    %55 = vector.extract_strided_slice %4 {offsets = [64, 0], sizes = [8, 256], strides = [1, 1]} : vector<72x256xf32> to vector<8x256xf32>
    %c239_i32 = arith.constant 239 : i32
    %56 = tpu.dynamic_rotate %55 by %c239_i32 dim 1 : vector<8x256xf32>, i32 -> vector<8x256xf32>
    %c8 = arith.constant 8 : index
    %c0_19 = arith.constant 0 : index
    %c0_20 = arith.constant 0 : index
    %57 = vector.load %arg2[%c8, %c0_19, %c0_20] : memref<9x1x256xf32, #tpu.memory_space<vmem>>, vector<1x1x256xf32>
    %58 = vector.shape_cast %57 : vector<1x1x256xf32> to vector<1x256xf32>
    %59 = vector.broadcast %58 : vector<1x256xf32> to vector<8x256xf32>
    %60 = arith.mulf %56, %59 : vector<8x256xf32>
    %61 = arith.addf %54, %60 : vector<8x256xf32>
    %c0_21 = arith.constant 0 : index
    %c0_22 = arith.constant 0 : index
    %62 = vector.load %arg4[%c0_21, %c0_22] : memref<8x1xf32, #tpu.memory_space<vmem>>, vector<8x1xf32>
    %63 = vector.broadcast %62 : vector<8x1xf32> to vector<8x256xf32>
    %64 = arith.addf %61, %63 : vector<8x256xf32>
    %cst_23 = arith.constant dense<0.000000e+00> : vector<8xf32>
    %65 = vector.multi_reduction <add>, %64, %cst_23 [1] : vector<8x256xf32> to vector<8xf32>
    %66 = vector.shape_cast %65 : vector<8xf32> to vector<8x1xf32>
    %cst_24 = arith.constant 2.560000e+02 : f32
    %67 = vector.broadcast %cst_24 : f32 to vector<8x1xf32>
    %68 = arith.divf %66, %67 : vector<8x1xf32>
    %69 = vector.broadcast %68 : vector<8x1xf32> to vector<8x256xf32>
    %70 = arith.subf %64, %69 : vector<8x256xf32>
    %71 = arith.mulf %70, %70 : vector<8x256xf32>
    %cst_25 = arith.constant dense<0.000000e+00> : vector<8xf32>
    %72 = vector.multi_reduction <add>, %71, %cst_25 [1] : vector<8x256xf32> to vector<8xf32>
    %73 = vector.shape_cast %72 : vector<8xf32> to vector<8x1xf32>
    %cst_26 = arith.constant 2.560000e+02 : f32
    %74 = vector.broadcast %cst_26 : f32 to vector<8x1xf32>
    %75 = arith.divf %73, %74 : vector<8x1xf32>
    %cst_27 = arith.constant 9.99999974E-6 : f32
    %76 = vector.broadcast %cst_27 : f32 to vector<8x1xf32>
    %77 = arith.addf %75, %76 : vector<8x1xf32>
    %78 = math.rsqrt %77 : vector<8x1xf32>
    %79 = vector.broadcast %78 : vector<8x1xf32> to vector<8x256xf32>
    %80 = arith.mulf %70, %79 : vector<8x256xf32>
    %cst_28 = arith.constant 0.000000e+00 : f32
    %81 = vector.broadcast %cst_28 : f32 to vector<8x256xf32>
    %82 = arith.maximumf %80, %81 : vector<8x256xf32>
    %83 = arith.truncf %82 : vector<8x256xf32> to vector<8x256xbf16>
    %c0_29 = arith.constant 0 : index
    %c0_30 = arith.constant 0 : index
    %84 = vector.load %arg5[%c0_29, %c0_30] : memref<72x8xbf16, #tpu.memory_space<vmem>>, vector<72x8xbf16>
    %cst_31 = arith.constant dense<0.000000e+00> : vector<72x256xf32>
    %85 = tpu.matmul %84, %83, %cst_31 {dimension_numbers = #tpu.dot_dimension_numbers<[1], [0], [0], [1], [0, 0, 1, 1], [], []>} : vector<72x8xbf16>, vector<8x256xbf16>, vector<72x256xf32> -> vector<72x256xf32>
    %86 = vector.extract_strided_slice %85 {offsets = [0, 0], sizes = [8, 256], strides = [1, 1]} : vector<72x256xf32> to vector<8x256xf32>
    %c17_i32_32 = arith.constant 17 : i32
    %87 = tpu.dynamic_rotate %86 by %c17_i32_32 dim 1 : vector<8x256xf32>, i32 -> vector<8x256xf32>
    %c0_33 = arith.constant 0 : index
    %c0_34 = arith.constant 0 : index
    %c0_35 = arith.constant 0 : index
    %88 = vector.load %arg2[%c0_33, %c0_34, %c0_35] : memref<9x1x256xf32, #tpu.memory_space<vmem>>, vector<1x1x256xf32>
    %89 = vector.shape_cast %88 : vector<1x1x256xf32> to vector<1x256xf32>
    %90 = vector.broadcast %89 : vector<1x256xf32> to vector<8x256xf32>
    %91 = arith.mulf %87, %90 : vector<8x256xf32>
    %92 = vector.extract_strided_slice %85 {offsets = [8, 0], sizes = [8, 256], strides = [1, 1]} : vector<72x256xf32> to vector<8x256xf32>
    %c16_i32_36 = arith.constant 16 : i32
    %93 = tpu.dynamic_rotate %92 by %c16_i32_36 dim 1 : vector<8x256xf32>, i32 -> vector<8x256xf32>
    %c1_37 = arith.constant 1 : index
    %c0_38 = arith.constant 0 : index
    %c0_39 = arith.constant 0 : index
    %94 = vector.load %arg2[%c1_37, %c0_38, %c0_39] : memref<9x1x256xf32, #tpu.memory_space<vmem>>, vector<1x1x256xf32>
    %95 = vector.shape_cast %94 : vector<1x1x256xf32> to vector<1x256xf32>
    %96 = vector.broadcast %95 : vector<1x256xf32> to vector<8x256xf32>
    %97 = arith.mulf %93, %96 : vector<8x256xf32>
    %98 = arith.addf %91, %97 : vector<8x256xf32>
    %99 = vector.extract_strided_slice %85 {offsets = [16, 0], sizes = [8, 256], strides = [1, 1]} : vector<72x256xf32> to vector<8x256xf32>
    %c15_i32_40 = arith.constant 15 : i32
    %100 = tpu.dynamic_rotate %99 by %c15_i32_40 dim 1 : vector<8x256xf32>, i32 -> vector<8x256xf32>
    %c2_41 = arith.constant 2 : index
    %c0_42 = arith.constant 0 : index
    %c0_43 = arith.constant 0 : index
    %101 = vector.load %arg2[%c2_41, %c0_42, %c0_43] : memref<9x1x256xf32, #tpu.memory_space<vmem>>, vector<1x1x256xf32>
    %102 = vector.shape_cast %101 : vector<1x1x256xf32> to vector<1x256xf32>
    %103 = vector.broadcast %102 : vector<1x256xf32> to vector<8x256xf32>
    %104 = arith.mulf %100, %103 : vector<8x256xf32>
    %105 = arith.addf %98, %104 : vector<8x256xf32>
    %106 = vector.extract_strided_slice %85 {offsets = [24, 0], sizes = [8, 256], strides = [1, 1]} : vector<72x256xf32> to vector<8x256xf32>
    %c1_i32_44 = arith.constant 1 : i32
    %107 = tpu.dynamic_rotate %106 by %c1_i32_44 dim 1 : vector<8x256xf32>, i32 -> vector<8x256xf32>
    %c3_45 = arith.constant 3 : index
    %c0_46 = arith.constant 0 : index
    %c0_47 = arith.constant 0 : index
    %108 = vector.load %arg2[%c3_45, %c0_46, %c0_47] : memref<9x1x256xf32, #tpu.memory_space<vmem>>, vector<1x1x256xf32>
    %109 = vector.shape_cast %108 : vector<1x1x256xf32> to vector<1x256xf32>
    %110 = vector.broadcast %109 : vector<1x256xf32> to vector<8x256xf32>
    %111 = arith.mulf %107, %110 : vector<8x256xf32>
    %112 = arith.addf %105, %111 : vector<8x256xf32>
    %113 = vector.extract_strided_slice %85 {offsets = [32, 0], sizes = [8, 256], strides = [1, 1]} : vector<72x256xf32> to vector<8x256xf32>
    %114 = arith.addf %112, %113 : vector<8x256xf32>
    %115 = vector.extract_strided_slice %85 {offsets = [40, 0], sizes = [8, 256], strides = [1, 1]} : vector<72x256xf32> to vector<8x256xf32>
    %c255_i32_48 = arith.constant 255 : i32
    %116 = tpu.dynamic_rotate %115 by %c255_i32_48 dim 1 : vector<8x256xf32>, i32 -> vector<8x256xf32>
    %c5_49 = arith.constant 5 : index
    %c0_50 = arith.constant 0 : index
    %c0_51 = arith.constant 0 : index
    %117 = vector.load %arg2[%c5_49, %c0_50, %c0_51] : memref<9x1x256xf32, #tpu.memory_space<vmem>>, vector<1x1x256xf32>
    %118 = vector.shape_cast %117 : vector<1x1x256xf32> to vector<1x256xf32>
    %119 = vector.broadcast %118 : vector<1x256xf32> to vector<8x256xf32>
    %120 = arith.mulf %116, %119 : vector<8x256xf32>
    %121 = arith.addf %114, %120 : vector<8x256xf32>
    %122 = vector.extract_strided_slice %85 {offsets = [48, 0], sizes = [8, 256], strides = [1, 1]} : vector<72x256xf32> to vector<8x256xf32>
    %c241_i32_52 = arith.constant 241 : i32
    %123 = tpu.dynamic_rotate %122 by %c241_i32_52 dim 1 : vector<8x256xf32>, i32 -> vector<8x256xf32>
    %c6_53 = arith.constant 6 : index
    %c0_54 = arith.constant 0 : index
    %c0_55 = arith.constant 0 : index
    %124 = vector.load %arg2[%c6_53, %c0_54, %c0_55] : memref<9x1x256xf32, #tpu.memory_space<vmem>>, vector<1x1x256xf32>
    %125 = vector.shape_cast %124 : vector<1x1x256xf32> to vector<1x256xf32>
    %126 = vector.broadcast %125 : vector<1x256xf32> to vector<8x256xf32>
    %127 = arith.mulf %123, %126 : vector<8x256xf32>
    %128 = arith.addf %121, %127 : vector<8x256xf32>
    %129 = vector.extract_strided_slice %85 {offsets = [56, 0], sizes = [8, 256], strides = [1, 1]} : vector<72x256xf32> to vector<8x256xf32>
    %c240_i32_56 = arith.constant 240 : i32
    %130 = tpu.dynamic_rotate %129 by %c240_i32_56 dim 1 : vector<8x256xf32>, i32 -> vector<8x256xf32>
    %c7_57 = arith.constant 7 : index
    %c0_58 = arith.constant 0 : index
    %c0_59 = arith.constant 0 : index
    %131 = vector.load %arg2[%c7_57, %c0_58, %c0_59] : memref<9x1x256xf32, #tpu.memory_space<vmem>>, vector<1x1x256xf32>
    %132 = vector.shape_cast %131 : vector<1x1x256xf32> to vector<1x256xf32>
    %133 = vector.broadcast %132 : vector<1x256xf32> to vector<8x256xf32>
    %134 = arith.mulf %130, %133 : vector<8x256xf32>
    %135 = arith.addf %128, %134 : vector<8x256xf32>
    %136 = vector.extract_strided_slice %85 {offsets = [64, 0], sizes = [8, 256], strides = [1, 1]} : vector<72x256xf32> to vector<8x256xf32>
    %c239_i32_60 = arith.constant 239 : i32
    %137 = tpu.dynamic_rotate %136 by %c239_i32_60 dim 1 : vector<8x256xf32>, i32 -> vector<8x256xf32>
    %c8_61 = arith.constant 8 : index
    %c0_62 = arith.constant 0 : index
    %c0_63 = arith.constant 0 : index
    %138 = vector.load %arg2[%c8_61, %c0_62, %c0_63] : memref<9x1x256xf32, #tpu.memory_space<vmem>>, vector<1x1x256xf32>
    %139 = vector.shape_cast %138 : vector<1x1x256xf32> to vector<1x256xf32>
    %140 = vector.broadcast %139 : vector<1x256xf32> to vector<8x256xf32>
    %141 = arith.mulf %137, %140 : vector<8x256xf32>
    %142 = arith.addf %135, %141 : vector<8x256xf32>
    %c0_64 = arith.constant 0 : index
    %c0_65 = arith.constant 0 : index
    %143 = vector.load %arg6[%c0_64, %c0_65] : memref<8x1xf32, #tpu.memory_space<vmem>>, vector<8x1xf32>
    %144 = vector.broadcast %143 : vector<8x1xf32> to vector<8x256xf32>
    %145 = arith.addf %142, %144 : vector<8x256xf32>
    %cst_66 = arith.constant dense<0.000000e+00> : vector<8xf32>
    %146 = vector.multi_reduction <add>, %145, %cst_66 [1] : vector<8x256xf32> to vector<8xf32>
    %147 = vector.shape_cast %146 : vector<8xf32> to vector<8x1xf32>
    %cst_67 = arith.constant 2.560000e+02 : f32
    %148 = vector.broadcast %cst_67 : f32 to vector<8x1xf32>
    %149 = arith.divf %147, %148 : vector<8x1xf32>
    %150 = vector.broadcast %149 : vector<8x1xf32> to vector<8x256xf32>
    %151 = arith.subf %145, %150 : vector<8x256xf32>
    %152 = arith.mulf %151, %151 : vector<8x256xf32>
    %cst_68 = arith.constant dense<0.000000e+00> : vector<8xf32>
    %153 = vector.multi_reduction <add>, %152, %cst_68 [1] : vector<8x256xf32> to vector<8xf32>
    %154 = vector.shape_cast %153 : vector<8xf32> to vector<8x1xf32>
    %cst_69 = arith.constant 2.560000e+02 : f32
    %155 = vector.broadcast %cst_69 : f32 to vector<8x1xf32>
    %156 = arith.divf %154, %155 : vector<8x1xf32>
    %cst_70 = arith.constant 9.99999974E-6 : f32
    %157 = vector.broadcast %cst_70 : f32 to vector<8x1xf32>
    %158 = arith.addf %156, %157 : vector<8x1xf32>
    %159 = math.rsqrt %158 : vector<8x1xf32>
    %160 = vector.broadcast %159 : vector<8x1xf32> to vector<8x256xf32>
    %161 = arith.mulf %151, %160 : vector<8x256xf32>
    %cst_71 = arith.constant 0.000000e+00 : f32
    %162 = vector.broadcast %cst_71 : f32 to vector<8x256xf32>
    %163 = arith.maximumf %161, %162 : vector<8x256xf32>
    %c0_72 = arith.constant 0 : index
    %c0_73 = arith.constant 0 : index
    %c0_74 = arith.constant 0 : index
    %164 = vector.load %arg1[%c0_72, %c0_73, %c0_74] : memref<1x4x256xf32, #tpu.memory_space<vmem>>, vector<1x4x256xf32>
    %165 = vector.shape_cast %164 : vector<1x4x256xf32> to vector<4x256xf32>
    %166 = vector.extract_strided_slice %163 {offsets = [0, 0], sizes = [4, 256], strides = [1, 1]} : vector<8x256xf32> to vector<4x256xf32>
    %167 = arith.addf %165, %166 : vector<4x256xf32>
    %c0_75 = arith.constant 0 : index
    %c0_76 = arith.constant 0 : index
    %c0_77 = arith.constant 0 : index
    %168 = vector.load %arg7[%c0_75, %c0_76, %c0_77] : memref<1x4x256xf32, #tpu.memory_space<vmem>>, vector<1x4x256xf32>
    %169 = vector.shape_cast %168 : vector<1x4x256xf32> to vector<4x256xf32>
    %170 = vector.shape_cast %167 : vector<4x256xf32> to vector<1x4x256xf32>
    tpu.vector_store %arg7[%c0_75, %c0_76, %c0_77], %170 {strides = array<i32>} : memref<1x4x256xf32, #tpu.memory_space<vmem>>, vector<1x4x256xf32>,
    return
  }
  func.func @transform_0(%arg0: i32) -> (i32, i32, i32) {
    %c0_i32 = arith.constant 0 : i32
    %c0_i32_0 = arith.constant 0 : i32
    %c0_i32_1 = arith.constant 0 : i32
    return %arg0, %c0_i32, %c0_i32_0 : i32, i32, i32
  }
  func.func @transform_1(%arg0: i32) -> (i32, i32, i32) {
    %c0_i32 = arith.constant 0 : i32
    %c0_i32_0 = arith.constant 0 : i32
    %c0_i32_1 = arith.constant 0 : i32
    %c0_i32_2 = arith.constant 0 : i32
    return %c0_i32, %c0_i32_0, %c0_i32_1 : i32, i32, i32
  }
  func.func @transform_2(%arg0: i32) -> (i32, i32) {
    %c0_i32 = arith.constant 0 : i32
    %c0_i32_0 = arith.constant 0 : i32
    %c0_i32_1 = arith.constant 0 : i32
    return %c0_i32, %c0_i32_0 : i32, i32
  }
  func.func @transform_3(%arg0: i32) -> (i32, i32) {
    %c0_i32 = arith.constant 0 : i32
    %c0_i32_0 = arith.constant 0 : i32
    %c0_i32_1 = arith.constant 0 : i32
    return %c0_i32, %c0_i32_0 : i32, i32
  }
  func.func @transform_4(%arg0: i32) -> (i32, i32) {
    %c0_i32 = arith.constant 0 : i32
    %c0_i32_0 = arith.constant 0 : i32
    %c0_i32_1 = arith.constant 0 : i32
    return %c0_i32, %c0_i32_0 : i32, i32
  }
  func.func @transform_5(%arg0: i32) -> (i32, i32) {
    %c0_i32 = arith.constant 0 : i32
    %c0_i32_0 = arith.constant 0 : i32
    %c0_i32_1 = arith.constant 0 : i32
    return %c0_i32, %c0_i32_0 : i32, i32
  }
  func.func @transform_6(%arg0: i32) -> (i32, i32, i32) {
    %c0_i32 = arith.constant 0 : i32
    %c0_i32_0 = arith.constant 0 : i32
    %c0_i32_1 = arith.constant 0 : i32
    return %arg0, %c0_i32, %c0_i32_0 : i32, i32, i32
  }
}

</mosaic_0001>

<llo_original>
// kernel: tpu_custom_call.1
$region0: #{tpu_custom_call.1}
  #allocation0 [shape = 'u32[]', space=smem, size = 0x4, offset = 0x4, fixed_abs, tag = 'smem constant byte address 0x4 - core index']
  #allocation1 [shape = 'u32[144,128]{1,0:T(1,128)}', space=vmem, size = 0x12000, scoped, tag = 'internal scratch']
  %s0 = inlined_call_operand.hbm [shape: f32[2,4,256], index: 0, kind: input, shape index: {}]
  %s1 = inlined_call_operand.hbm [shape: f32[9,1,256], index: 1, kind: input, shape index: {}]
  %s2 = inlined_call_operand.hbm [shape: bf16[72,4], index: 2, kind: input, shape index: {}]
  %s3 = inlined_call_operand.hbm [shape: f32[8,1], index: 3, kind: input, shape index: {}]
  %s4 = inlined_call_operand.hbm [shape: bf16[72,8], index: 4, kind: input, shape index: {}]
  %s5 = inlined_call_operand.hbm [shape: f32[8,1], index: 5, kind: input, shape index: {}]
  %s6 = inlined_call_operand.hbm [shape: f32[2,4,256], index: 6, kind: output, shape index: {}]
  %s7 = sld [smem:[#allocation0]]
  $region81: #{tpu_custom_call.1} parent=0
    _
  %s9 = ssub.s32 1, %s7
  %s10 = scalar_select 0, %s9, %s7
  $region1: #{tpu_custom_call.1} parent=0
    #allocation2 [shape = 'u8[8192]{0}', space=vmem, size = 0x2000, scoped, tag = 'input window, operand 0']
    #allocation3 [shape = 's32[2]{0}', space=sflag, size = 0x8, scoped, tag = 'scoped memory for tpu_custom_call.1']
    #allocation4 [shape = 's32[2]{0}', space=sflag, size = 0x8, scoped, tag = 'scoped memory for tpu_custom_call.1']
    #allocation5 [shape = 'u8[9216]{0}', space=vmem, size = 0x2400, scoped, tag = 'input window, operand 1, single buffered']
    #allocation6 [shape = 's32[1]{0}', space=sflag, size = 0x4, scoped, tag = 'scoped memory for tpu_custom_call.1']
    #allocation7 [shape = 'u8[18432]{0}', space=vmem, size = 0x4800, scoped, tag = 'input window, operand 2, single buffered']
    #allocation8 [shape = 'u8[4096]{0}', space=vmem, size = 0x1000, scoped, tag = 'input window, operand 3, single buffered']
    #allocation9 [shape = 's32[1]{0}', space=sflag, size = 0x4, scoped, tag = 'scoped memory for tpu_custom_call.1']
    #allocation10 [shape = 'u8[18432]{0}', space=vmem, size = 0x4800, scoped, tag = 'input window, operand 4, single buffered']
    #allocation11 [shape = 'u8[4096]{0}', space=vmem, size = 0x1000, scoped, tag = 'input window, operand 5, single buffered']
    #allocation12 [shape = 's32[1]{0}', space=sflag, size = 0x4, scoped, tag = 'scoped memory for tpu_custom_call.1']
    #allocation13 [shape = 'u8[8192]{0}', space=vmem, size = 0x2000, scoped, tag = 'output window, operand 0']
    %11 = vsyncpa [#allocation3], 0
    %s12 = scalar_lea.sflag [#allocation3], 1
    %13 = vsyncpa %s12, 0
    %14 = vsyncpa [#allocation6], 0
    %15 = vsyncpa [#allocation9], 0
    %16 = vsyncpa [#allocation12], 0
    %17 = vsyncpa [#allocation4], 0
    %s18 = scalar_lea.sflag [#allocation4], 1
    %19 = vsyncpa %s18, 0
    loop: start=0, step=1, limit=4
    $region2: #{tpu_custom_call.1} parent=1 // loop_pre_header
      _
    $region3: #{tpu_custom_call.1} parent=1 // loop_header
      %s21 = sphi 0, %s25
      %p22 = scmp.ge.s32.totalorder %s21, 4
      %s31 = sphi 0, %s33
      %s34 = sphi 0, %s31
      %s35 = sphi 0, %s34
      %s51 = sphi 0, %s35
      %s55 = sphi 0, %s55
      %s57 = sphi 0, %s55
      %s58 = sphi 0, %s57
      %s72 = sphi 0, %s58
      %s76 = sphi 0, %s76
      %s78 = sphi 0, %s76
      %s79 = sphi 0, %s78
      %s93 = sphi 0, %s79
      %s97 = sphi 0, %s97
      %s99 = sphi 0, %s97
      %s100 = sphi 0, %s99
      %s114 = sphi 0, %s100
      %s118 = sphi 0, %s118
      %s120 = sphi 0, %s118
      %s121 = sphi 0, %s120
      %s135 = sphi 0, %s121
      %s139 = sphi 0, %s139
      %s141 = sphi 0, %s139
      %s142 = sphi 0, %s141
      %s156 = sphi 0, %s142
      %s162 = sphi 0, %s164
      %s165 = sphi 0, %s162
      %s166 = sphi 0, %s165
      %s182 = sphi 0, %s166
    $region4: #{tpu_custom_call.1} parent=1 // loop_header_branch
      %24 = sbr.rel (%p22) target = $region8
    $region5: #{tpu_custom_call.1} parent=1 // loop_body
      %s26 = ssub.s32 %s21, 1
      %s27 = ssub.s32 %s21, 2
      %s28 = sadd.s32 %s21, 1
      %s29 = ssub.s32 %s21, %s28
      %p30 = scmp.eq.s32.totalorder %s29, 0
      %s32 = sadd.s32 %s31, 1
      %s33 = scalar_select %p30, %s31, %s32
      %p36 = pneg %p30
      %p37 = scmp.eq.s32.totalorder %s21, 1
      %p38 = por %p36, %p37
      %p39 = scmp.ne.s32.totalorder %s31, %s34
      %p40 = scmp.eq.s32.totalorder %s21, 0
      %p41 = por %p39, %p40
      %p42 = scmp.ne.s32.totalorder %s31, %s34
      %p43 = scmp.eq.s32.totalorder %s26, 1
      %p44 = por %p42, %p43
      %p45 = scmp.ne.s32.totalorder %s34, %s35
      %p46 = scmp.eq.s32.totalorder %s26, 0
      %p47 = por %p45, %p46
      %p48 = scmp.ne.s32.totalorder %s34, %s35
      %p49 = scmp.eq.s32.totalorder %s27, 1
      %p50 = por %p48, %p49
      %p52 = scmp.ne.s32.totalorder %s35, %s51
      %p53 = scmp.eq.s32.totalorder %s27, 0
      %p54 = por %p52, %p53
      %s56 = sadd.s32 %s55, 1
      %p59 = scmp.eq.s32.totalorder %s21, 1
      %p60 = scmp.ne.s32.totalorder %s55, %s57
      %p61 = scmp.eq.s32.totalorder %s21, 0
      %p62 = por %p60, %p61
      %p63 = scmp.ne.s32.totalorder %s55, %s57
      %p64 = scmp.eq.s32.totalorder %s26, 1
      %p65 = por %p63, %p64
      %p66 = scmp.ne.s32.totalorder %s57, %s58
      %p67 = scmp.eq.s32.totalorder %s26, 0
      %p68 = por %p66, %p67
      %p69 = scmp.ne.s32.totalorder %s57, %s58
      %p70 = scmp.eq.s32.totalorder %s27, 1
      %p71 = por %p69, %p70
      %p73 = scmp.ne.s32.totalorder %s58, %s72
      %p74 = scmp.eq.s32.totalorder %s27, 0
      %p75 = por %p73, %p74
      %s77 = sadd.s32 %s76, 1
      %p80 = scmp.eq.s32.totalorder %s21, 1
      %p81 = scmp.ne.s32.totalorder %s76, %s78
      %p82 = scmp.eq.s32.totalorder %s21, 0
      %p83 = por %p81, %p82
      %p84 = scmp.ne.s32.totalorder %s76, %s78
      %p85 = scmp.eq.s32.totalorder %s26, 1
      %p86 = por %p84, %p85
      %p87 = scmp.ne.s32.totalorder %s78, %s79
      %p88 = scmp.eq.s32.totalorder %s26, 0
      %p89 = por %p87, %p88
      %p90 = scmp.ne.s32.totalorder %s78, %s79
      %p91 = scmp.eq.s32.totalorder %s27, 1
      %p92 = por %p90, %p91
      %p94 = scmp.ne.s32.totalorder %s79, %s93
      %p95 = scmp.eq.s32.totalorder %s27, 0
      %p96 = por %p94, %p95
      %s98 = sadd.s32 %s97, 1
      %p101 = scmp.eq.s32.totalorder %s21, 1
      %p102 = scmp.ne.s32.totalorder %s97, %s99
      %p103 = scmp.eq.s32.totalorder %s21, 0
      %p104 = por %p102, %p103
      %p105 = scmp.ne.s32.totalorder %s97, %s99
      %p106 = scmp.eq.s32.totalorder %s26, 1
      %p107 = por %p105, %p106
      %p108 = scmp.ne.s32.totalorder %s99, %s100
      %p109 = scmp.eq.s32.totalorder %s26, 0
      %p110 = por %p108, %p109
      %p111 = scmp.ne.s32.totalorder %s99, %s100
      %p112 = scmp.eq.s32.totalorder %s27, 1
      %p113 = por %p111, %p112
      %p115 = scmp.ne.s32.totalorder %s100, %s114
      %p116 = scmp.eq.s32.totalorder %s27, 0
      %p117 = por %p115, %p116
      %s119 = sadd.s32 %s118, 1
      %p122 = scmp.eq.s32.totalorder %s21, 1
      %p123 = scmp.ne.s32.totalorder %s118, %s120
      %p124 = scmp.eq.s32.totalorder %s21, 0
      %p125 = por %p123, %p124
      %p126 = scmp.ne.s32.totalorder %s118, %s120
      %p127 = scmp.eq.s32.totalorder %s26, 1
      %p128 = por %p126, %p127
      %p129 = scmp.ne.s32.totalorder %s120, %s121
      %p130 = scmp.eq.s32.totalorder %s26, 0
      %p131 = por %p129, %p130
      %p132 = scmp.ne.s32.totalorder %s120, %s121
      %p133 = scmp.eq.s32.totalorder %s27, 1
      %p134 = por %p132, %p133
      %p136 = scmp.ne.s32.totalorder %s121, %s135
      %p137 = scmp.eq.s32.totalorder %s27, 0
      %p138 = por %p136, %p137
      %s140 = sadd.s32 %s139, 1
      %p143 = scmp.eq.s32.totalorder %s21, 1
      %p144 = scmp.ne.s32.totalorder %s139, %s141
      %p145 = scmp.eq.s32.totalorder %s21, 0
      %p146 = por %p144, %p145
      %p147 = scmp.ne.s32.totalorder %s139, %s141
      %p148 = scmp.eq.s32.totalorder %s26, 1
      %p149 = por %p147, %p148
      %p150 = scmp.ne.s32.totalorder %s141, %s142
      %p151 = scmp.eq.s32.totalorder %s26, 0
      %p152 = por %p150, %p151
      %p153 = scmp.ne.s32.totalorder %s141, %s142
      %p154 = scmp.eq.s32.totalorder %s27, 1
      %p155 = por %p153, %p154
      %p157 = scmp.ne.s32.totalorder %s142, %s156
      %p158 = scmp.eq.s32.totalorder %s27, 0
      %p159 = por %p157, %p158
      %s160 = ssub.s32 %s21, %s28
      %p161 = scmp.eq.s32.totalorder %s160, 0
      %s163 = sadd.s32 %s162, 1
      %s164 = scalar_select %p161, %s162, %s163
      %p167 = pneg %p161
      %p168 = scmp.eq.s32.totalorder %s21, 1
      %p169 = por %p167, %p168
      %p170 = scmp.ne.s32.totalorder %s162, %s165
      %p171 = scmp.eq.s32.totalorder %s21, 0
      %p172 = por %p170, %p171
      %p173 = scmp.ne.s32.totalorder %s162, %s165
      %p174 = scmp.eq.s32.totalorder %s26, 1
      %p175 = por %p173, %p174
      %p176 = scmp.ne.s32.totalorder %s165, %s166
      %p177 = scmp.eq.s32.totalorder %s26, 0
      %p178 = por %p176, %p177
      %p179 = scmp.ne.s32.totalorder %s165, %s166
      %p180 = scmp.eq.s32.totalorder %s27, 1
      %p181 = por %p179, %p180
      %p183 = scmp.ne.s32.totalorder %s166, %s182
      %p184 = scmp.eq.s32.totalorder %s27, 0
      %p185 = por %p183, %p184
      %p186 = scmp.le.s32.totalorder 1, %s21
      %p187 = scmp.lt.s32.totalorder %s21, 3
      %p188 = pnand %p186, %p187
      %p189 = pneg %p188
      // Predicated region
      $region9: #{tpu_custom_call.1} parent=5 // pred_check
        _
      $region10: #{tpu_custom_call.1} parent=5 // pred_check_branch
        %191 = sbr.rel (%p188) target = $region12
      $region11: #{tpu_custom_call.1} parent=5 // pred_region
        %s192 = ssub.s32 %s21, 1
        // Predicated region
        $region13: #{tpu_custom_call.1} parent=11 // pred_check
          %p193 = pneg %p68
        $region14: #{tpu_custom_call.1} parent=11 // pred_check_branch
          %195 = sbr.rel (%p193) target = $region16
        $region15: #{tpu_custom_call.1} parent=11 // pred_region
          %s197 = ssub.s32 288, 288
          %198 = vsyncadd [#allocation6], %s197
          %s199 = sshll.u32 [#allocation5], 4
          %s200 = int_to_ptr.vmem [resolvable:$true] %s199
          %205 = dma.hbm_to_vmem [thread:$0]  %s1, 288, %s200, [#allocation6], 32, 32, 2
        $region16: #{tpu_custom_call.1} parent=11 // pred_fallthru
          _
        // Predicated region
        $region17: #{tpu_custom_call.1} parent=11 // pred_check
          %p206 = pneg %p89
        $region18: #{tpu_custom_call.1} parent=11 // pred_check_branch
          %208 = sbr.rel (%p206) target = $region20
        $region19: #{tpu_custom_call.1} parent=11 // pred_region
          %s210 = ssub.s32 576, 576
          %211 = vsyncadd [#allocation6], %s210
          %s212 = sshll.u32 [#allocation7], 4
          %s213 = int_to_ptr.vmem [resolvable:$true] %s212
          %218 = dma.hbm_to_vmem [thread:$0]  %s2, 576, %s213, [#allocation6], 64, 64, 4
        $region20: #{tpu_custom_call.1} parent=11 // pred_fallthru
          _
        // Predicated region
        $region21: #{tpu_custom_call.1} parent=11 // pred_check
          %p219 = pneg %p110
        $region22: #{tpu_custom_call.1} parent=11 // pred_check_branch
          %221 = sbr.rel (%p219) target = $region24
        $region23: #{tpu_custom_call.1} parent=11 // pred_region
          %s223 = ssub.s32 128, 128
          %224 = vsyncadd [#allocation9], %s223
          %s226 = sshll.u32 [#allocation8], 4
          %s227 = int_to_ptr.vmem [resolvable:$true] %s226
          %229 = dma.hbm_to_vmem [thread:$0]  %s3, 128, %s227, [#allocation9]
        $region24: #{tpu_custom_call.1} parent=11 // pred_fallthru
          _
        // Predicated region
        $region25: #{tpu_custom_call.1} parent=11 // pred_check
          %p230 = pneg %p131
        $region26: #{tpu_custom_call.1} parent=11 // pred_check_branch
          %232 = sbr.rel (%p230) target = $region28
        $region27: #{tpu_custom_call.1} parent=11 // pred_region
          %s234 = ssub.s32 576, 576
          %235 = vsyncadd [#allocation9], %s234
          %s236 = sshll.u32 [#allocation10], 4
          %s237 = int_to_ptr.vmem [resolvable:$true] %s236
          %242 = dma.hbm_to_vmem [thread:$0]  %s4, 576, %s237, [#allocation9], 64, 64, 4
        $region28: #{tpu_custom_call.1} parent=11 // pred_fallthru
          _
        // Predicated region
        $region29: #{tpu_custom_call.1} parent=11 // pred_check
          %p243 = pneg %p152
        $region30: #{tpu_custom_call.1} parent=11 // pred_check_branch
          %245 = sbr.rel (%p243) target = $region32
        $region31: #{tpu_custom_call.1} parent=11 // pred_region
          %s247 = ssub.s32 128, 128
          %248 = vsyncadd [#allocation12], %s247
          %s250 = sshll.u32 [#allocation11], 4
          %s251 = int_to_ptr.vmem [resolvable:$true] %s250
          %253 = dma.hbm_to_vmem [thread:$0]  %s5, 128, %s251, [#allocation12]
        $region32: #{tpu_custom_call.1} parent=11 // pred_fallthru
          _
      $region12: #{tpu_custom_call.1} parent=5 // pred_fallthru
        _
      %p254 = scmp.lt.s32.totalorder %s21, 2
      // Predicated region
      $region33: #{tpu_custom_call.1} parent=5 // pred_check
        %p255 = pneg %p254
      $region34: #{tpu_custom_call.1} parent=5 // pred_check_branch
        %257 = sbr.rel (%p255) target = $region36
      $region35: #{tpu_custom_call.1} parent=5 // pred_region
        // Predicated region
        $region37: #{tpu_custom_call.1} parent=35 // pred_check
          %p258 = pneg %p41
        $region38: #{tpu_custom_call.1} parent=35 // pred_check_branch
          %260 = sbr.rel (%p258) target = $region40
        $region39: #{tpu_custom_call.1} parent=35 // pred_region
          %s261 = sand.u32 %s31, 1
          %s262 = scalar_lea.sflag [#allocation3], %s261
          %s263 = sand.u32 %s31, 1
          %s264 = smul.addr %s263, 8
          %s265 = scalar_lea.vmem [#allocation2], %s264
          %s267 = ssub.s32 128, 128
          %268 = vsyncadd %s262, %s267
          %s269 = smul.addr %s21, 2
          %s270 = smul.addr %s269, 64
          %s271 = scalar_lea.hbm %s0, %s270
          %s273 = sshll.u32 %s265, 4
          %s274 = int_to_ptr.vmem [resolvable:$true] %s273
          %276 = dma.hbm_to_vmem [thread:$0]  %s271, 128, %s274, %s262
        $region40: #{tpu_custom_call.1} parent=35 // pred_fallthru
          _
      $region36: #{tpu_custom_call.1} parent=5 // pred_fallthru
        _
      %p277 = scmp.le.s32.totalorder 1, %s21
      %p278 = scmp.lt.s32.totalorder %s21, 3
      %p279 = pnand %p277, %p278
      %p280 = pneg %p279
      // Predicated region
      $region41: #{tpu_custom_call.1} parent=5 // pred_check
        _
      $region42: #{tpu_custom_call.1} parent=5 // pred_check_branch
        %282 = sbr.rel (%p279) target = $region44
      $region43: #{tpu_custom_call.1} parent=5 // pred_region
        %s283 = ssub.s32 %s21, 1
        %s284 = sand.u32 %s34, 1
        %s285 = scalar_lea.sflag [#allocation3], %s284
        %s286 = sand.u32 %s34, 1
        %s287 = smul.addr %s286, 8
        %s288 = scalar_lea.vmem [#allocation2], %s287
        // Predicated region
        $region45: #{tpu_custom_call.1} parent=43 // pred_check
          %p289 = pneg %p47
        $region46: #{tpu_custom_call.1} parent=43 // pred_check_branch
          %291 = sbr.rel (%p289) target = $region48
        $region47: #{tpu_custom_call.1} parent=43 // pred_region
          %292 = dma.done %s285, 128
        $region48: #{tpu_custom_call.1} parent=43 // pred_fallthru
          _
        // Predicated region
        $region49: #{tpu_custom_call.1} parent=43 // pred_check
          %p293 = pneg %p68
        $region50: #{tpu_custom_call.1} parent=43 // pred_check_branch
          %295 = sbr.rel (%p293) target = $region52
        $region51: #{tpu_custom_call.1} parent=43 // pred_region
          %296 = dma.done [#allocation6], 288
        $region52: #{tpu_custom_call.1} parent=43 // pred_fallthru
          _
        // Predicated region
        $region53: #{tpu_custom_call.1} parent=43 // pred_check
          %p297 = pneg %p89
        $region54: #{tpu_custom_call.1} parent=43 // pred_check_branch
          %299 = sbr.rel (%p297) target = $region56
        $region55: #{tpu_custom_call.1} parent=43 // pred_region
          %300 = dma.done [#allocation6], 576
        $region56: #{tpu_custom_call.1} parent=43 // pred_fallthru
          _
        // Predicated region
        $region57: #{tpu_custom_call.1} parent=43 // pred_check
          %p301 = pneg %p110
        $region58: #{tpu_custom_call.1} parent=43 // pred_check_branch
          %303 = sbr.rel (%p301) target = $region60
        $region59: #{tpu_custom_call.1} parent=43 // pred_region
          %304 = dma.done [#allocation9], 128
        $region60: #{tpu_custom_call.1} parent=43 // pred_fallthru
          _
        // Predicated region
        $region61: #{tpu_custom_call.1} parent=43 // pred_check
          %p305 = pneg %p131
        $region62: #{tpu_custom_call.1} parent=43 // pred_check_branch
          %307 = sbr.rel (%p305) target = $region64
        $region63: #{tpu_custom_call.1} parent=43 // pred_region
          %308 = dma.done [#allocation9], 576
        $region64: #{tpu_custom_call.1} parent=43 // pred_fallthru
          _
        // Predicated region
        $region65: #{tpu_custom_call.1} parent=43 // pred_check
          %p309 = pneg %p152
        $region66: #{tpu_custom_call.1} parent=43 // pred_check_branch
          %311 = sbr.rel (%p309) target = $region68
        $region67: #{tpu_custom_call.1} parent=43 // pred_region
          %312 = dma.done [#allocation12], 128
        $region68: #{tpu_custom_call.1} parent=43 // pred_fallthru
          _
        %s313 = sand.u32 %s34, 1
        %s314 = scalar_lea.sflag [#allocation3], %s313
        %s315 = sand.u32 %s34, 1
        %s316 = smul.addr %s315, 8
        %s317 = scalar_lea.vmem [#allocation2], %s316
        %p318 = pneg %p47
        %p319 = pneg %p44
        %p320 = pneg %p68
        %p321 = pneg %p65
        %p322 = pneg %p89
        %p323 = pneg %p86
        %p324 = pneg %p110
        %p325 = pneg %p107
        %p326 = pneg %p131
        %p327 = pneg %p128
        %p328 = pneg %p152
        %p329 = pneg %p149
        %p330 = pneg %p178
        %p331 = pneg %p175
        %s332 = sand.u32 %s165, 1
        %s333 = scalar_lea.sflag [#allocation4], %s332
        %s334 = sand.u32 %s165, 1
        %s335 = smul.addr %s334, 8
        %s336 = scalar_lea.vmem [#allocation13], %s335
        %v338 = vld [vmem:[%s288] sm:$0xff]
        %v340 = vcombine.high %v338, %v338
        %v342 = vpack.c.bf16 %v338, %v338
        %v343 = vpack.c.bf16 %v340, %v340
        %v344 = vld [vmem:[#allocation7] sm:$0xf]
        %v345 = vld [vmem:[#allocation7 + $0x4] sm:$0xf]
        %v346 = vld [vmem:[#allocation7 + $0x8] sm:$0xf]
        %v347 = vld [vmem:[#allocation7 + $0xc] sm:$0xf]
        %v348 = vld [vmem:[#allocation7 + $0x10] sm:$0xf]
        %v349 = vld [vmem:[#allocation7 + $0x14] sm:$0xf]
        %v350 = vld [vmem:[#allocation7 + $0x18] sm:$0xf]
        %v351 = vld [vmem:[#allocation7 + $0x1c] sm:$0xf]
        %v352 = vld [vmem:[#allocation7 + $0x20] sm:$0xf]
        %v362 = vunpack.c.l.b16 %v344
        %v363 = vunpack.c.l.b16 %v345
        %v364 = vunpack.c.l.b16 %v346
        %v365 = vunpack.c.l.b16 %v347
        %v366 = vunpack.c.l.b16 %v348
        %v367 = vunpack.c.l.b16 %v349
        %v368 = vunpack.c.l.b16 %v350
        %v369 = vunpack.c.l.b16 %v351
        %v370 = vunpack.c.l.b16 %v352
        %v371 = vpack.c.b16 %v363, %v362
        %v372 = vpack.c.b16 %v365, %v364
        %v373 = vpack.c.b16 %v367, %v366
        %v374 = vpack.c.b16 %v369, %v368
        %v375 = vpack.c.b16 %v370, %v370
        %vm376 = vcmask 31744
        %v378 = vsel %vm376, %v371, 0
        %v381 = vsel %vm376, %v372, 0
        %v384 = vsel %vm376, %v373, 0
        %v387 = vsel %vm376, %v374, 0
        %v390 = vsel %vm376, %v375, 0
        %vm392 = vcmask 1041408
        %v394 = vsel %vm392, %v342, 0
        %v397 = vsel %vm392, %v343, 0
        %399 = vmatprep.subr.bf16.mxu0 %v397
        %400 = vmatpush1.bf16.msra.mxu0 %v394
        %401 = vmatprep.subr.bf16.mxu0 0
        %402 = vmatpush1.bf16.msra.mxu0 0
        %403 = vmatprep.subr.bf16.mxu0 0
        %404 = vmatpush1.bf16.msra.mxu0 0
        %405 = vmatprep.subr.bf16.mxu0 0
        %406 = vmatpush1.bf16.msra.mxu0 0
        %407 = vmatprep.subr.bf16.mxu0 0
        %408 = vmatpush1.bf16.msra.mxu0 0
        %409 = vmatprep.subr.bf16.mxu0 0
        %410 = vmatpush1.bf16.msra.mxu0 0
        %411 = vmatprep.subr.bf16.mxu0 0
        %412 = vmatpush1.bf16.msra.mxu0 0
        %413 = vmatprep.subr.bf16.mxu0 0
        %414 = vmatpush1.bf16.msra.mxu0 0
        %415 = vmatprep.subr.bf16.mxu0 0
        %416 = vmatpush1.bf16.msra.mxu0 0
        %417 = vmatprep.subr.bf16.mxu0 0
        %418 = vmatpush1.bf16.msra.mxu0 0
        %419 = vmatprep.subr.bf16.mxu0 0
        %420 = vmatpush1.bf16.msra.mxu0 0
        %421 = vmatprep.subr.bf16.mxu0 0
        %422 = vmatpush1.bf16.msra.mxu0 0
        %423 = vmatprep.subr.bf16.mxu0 0
        %424 = vmatpush1.bf16.msra.mxu0 0
        %425 = vmatprep.subr.bf16.mxu0 0
        %426 = vmatpush1.bf16.msra.mxu0 0
        %427 = vmatprep.subr.bf16.mxu0 0
        %428 = vmatpush1.bf16.msra.mxu0 0
        %429 = vmatprep.subr.bf16.mxu0 0
        %430 = vmatpush1.bf16.msra.mxu0 0
        %431 = vmatprep.mubr.bf16.mxu0 0
        %432 = vmatmul.mubr.bf16.gmra.mrb[0].mxu0 %v378
        %v433 = vpop.f32.mrb[0].mxu0
        %v434 = vadd.f32 0.0, %v433
        %v435 = vpop.f32.mrb[0].mxu0
        %v436 = vadd.f32 0.0, %v435
        %v437 = vpop.f32.mrb[0].mxu0
        %v438 = vadd.f32 0.0, %v437
        %v439 = vpop.f32.mrb[0].mxu0
        %v440 = vadd.f32 0.0, %v439
        %441 = vmatprep.mubr.bf16.mxu0 0
        %442 = vmatmul.mubr.bf16.gmra.mrb[0].mxu0 %v381
        %v443 = vpop.f32.mrb[0].mxu0
        %v444 = vadd.f32 0.0, %v443
        %v445 = vpop.f32.mrb[0].mxu0
        %v446 = vadd.f32 0.0, %v445
        %v447 = vpop.f32.mrb[0].mxu0
        %v448 = vadd.f32 0.0, %v447
        %v449 = vpop.f32.mrb[0].mxu0
        %v450 = vadd.f32 0.0, %v449
        %451 = vmatprep.mubr.bf16.mxu0 0
        %452 = vmatmul.mubr.bf16.gmra.mrb[0].mxu0 %v384
        %v453 = vpop.f32.mrb[0].mxu0
        %v454 = vadd.f32 0.0, %v453
        %v455 = vpop.f32.mrb[0].mxu0
        %v456 = vadd.f32 0.0, %v455
        %v457 = vpop.f32.mrb[0].mxu0
        %v458 = vadd.f32 0.0, %v457
        %v459 = vpop.f32.mrb[0].mxu0
        %v460 = vadd.f32 0.0, %v459
        %461 = vmatprep.mubr.bf16.mxu0 0
        %462 = vmatmul.mubr.bf16.gmra.mrb[0].mxu0 %v387
        %v463 = vpop.f32.mrb[0].mxu0
        %v464 = vadd.f32 0.0, %v463
        %v465 = vpop.f32.mrb[0].mxu0
        %v466 = vadd.f32 0.0, %v465
        %v467 = vpop.f32.mrb[0].mxu0
        %v468 = vadd.f32 0.0, %v467
        %v469 = vpop.f32.mrb[0].mxu0
        %v470 = vadd.f32 0.0, %v469
        %471 = vmatprep.mubr.bf16.mxu0 0
        %472 = vmatmul.mubr.bf16.gmra.mrb[0].mxu0 %v390
        %v473 = vpop.f32.mrb[0].mxu0
        %v474 = vadd.f32 0.0, %v473
        %v475 = vpop.f32.mrb[0].mxu0
        %v476 = vadd.f32 0.0, %v475
        %v477 = vpop.f32.mrb[0].mxu0
        %v478 = vpop.f32.mrb[0].mxu0
        %479 = vdwg.mxu0
        %480 = vrot.lane.b32.xlu0 %v434, 17
        %v481 = vpop.permute.xlu0 %480
        %482 = vrot.lane.b32.xlu0 %v436, 17
        %v483 = vpop.permute.xlu0 %482
        %v484 = vlaneseq
        %v485 = vand.u32 %v484, 127
        %vm486 = vcmp.lt.s32.totalorder %v485, 17
        %v487 = vsel %vm486, %v481, %v483
        %v488 = vsel %vm486, %v483, %v481
        %v489 = vld [vmem:[#allocation5] sm:$0x3]
        %v491 = vlaneseq
        %v492 = vshrl.u32 %v491, 7
        %v493 = vsub.s32 0, %v492
        %v494 = vrot.slane %v489, %v493
        %v495 = vlaneseq
        %v496 = vshrl.u32 %v495, 7
        %v497 = vsub.s32 1, %v496
        %v498 = vrot.slane %v489, %v497
        %v501 = vmul.f32 %v488, %v494
        %v502 = vmul.f32 %v487, %v498
        %503 = vrot.lane.b32.xlu0 %v438, 16
        %v504 = vpop.permute.xlu0 %503
        %505 = vrot.lane.b32.xlu0 %v440, 16
        %v506 = vpop.permute.xlu0 %505
        %vm507 = vcmp.lt.s32.totalorder %v485, 16
        %v508 = vsel %vm507, %v504, %v506
        %v509 = vsel %vm507, %v506, %v504
        %s510 = scalar_lea.vmem [#allocation5], 2
        %v511 = vld [vmem:[%s510] sm:$0x3]
        %v513 = vlaneseq
        %v514 = vshrl.u32 %v513, 7
        %v515 = vsub.s32 0, %v514
        %v516 = vrot.slane %v511, %v515
        %v517 = vlaneseq
        %v518 = vshrl.u32 %v517, 7
        %v519 = vsub.s32 1, %v518
        %v520 = vrot.slane %v511, %v519
        %v523 = vmul.f32 %v509, %v516
        %v524 = vmul.f32 %v508, %v520
        %v525 = vadd.f32 %v501, %v523
        %v526 = vadd.f32 %v502, %v524
        %527 = vrot.lane.b32.xlu0 %v444, 15
        %v528 = vpop.permute.xlu0 %527
        %529 = vrot.lane.b32.xlu0 %v446, 15
        %v530 = vpop.permute.xlu0 %529
        %vm531 = vcmp.lt.s32.totalorder %v485, 15
        %v532 = vsel %vm531, %v528, %v530
        %v533 = vsel %vm531, %v530, %v528
        %s534 = scalar_lea.vmem [#allocation5], 4
        %v535 = vld [vmem:[%s534] sm:$0x3]
        %v537 = vlaneseq
        %v538 = vshrl.u32 %v537, 7
        %v539 = vsub.s32 0, %v538
        %v540 = vrot.slane %v535, %v539
        %v541 = vlaneseq
        %v542 = vshrl.u32 %v541, 7
        %v543 = vsub.s32 1, %v542
        %v544 = vrot.slane %v535, %v543
        %v547 = vmul.f32 %v533, %v540
        %v548 = vmul.f32 %v532, %v544
        %v549 = vadd.f32 %v525, %v547
        %v550 = vadd.f32 %v526, %v548
        %551 = vrot.lane.b32.xlu0 %v448, 1
        %v552 = vpop.permute.xlu0 %551
        %553 = vrot.lane.b32.xlu0 %v450, 1
        %v554 = vpop.permute.xlu0 %553
        %vm555 = vcmp.lt.s32.totalorder %v485, 1
        %v556 = vsel %vm555, %v552, %v554
        %v557 = vsel %vm555, %v554, %v552
        %s558 = scalar_lea.vmem [#allocation5], 6
        %v559 = vld [vmem:[%s558] sm:$0x3]
        %v561 = vlaneseq
        %v562 = vshrl.u32 %v561, 7
        %v563 = vsub.s32 0, %v562
        %v564 = vrot.slane %v559, %v563
        %v565 = vlaneseq
        %v566 = vshrl.u32 %v565, 7
        %v567 = vsub.s32 1, %v566
        %v568 = vrot.slane %v559, %v567
        %v571 = vmul.f32 %v557, %v564
        %v572 = vmul.f32 %v556, %v568
        %v573 = vadd.f32 %v549, %v571
        %v574 = vadd.f32 %v550, %v572
        %v575 = vadd.f32 %v573, %v454
        %v576 = vadd.f32 %v574, %v456
        %577 = vrot.lane.b32.xlu0 %v458, 127
        %v578 = vpop.permute.xlu0 %577
        %579 = vrot.lane.b32.xlu0 %v460, 127
        %v580 = vpop.permute.xlu0 %579
        %vm581 = vcmp.lt.s32.totalorder %v485, 127
        %v582 = vsel %vm581, %v578, %v580
        %v583 = vsel %vm581, %v580, %v578
        %s584 = scalar_lea.vmem [#allocation5], 10
        %v585 = vld [vmem:[%s584] sm:$0x3]
        %v587 = vlaneseq
        %v588 = vshrl.u32 %v587, 7
        %v589 = vsub.s32 0, %v588
        %v590 = vrot.slane %v585, %v589
        %v591 = vlaneseq
        %v592 = vshrl.u32 %v591, 7
        %v593 = vsub.s32 1, %v592
        %v594 = vrot.slane %v585, %v593
        %v597 = vmul.f32 %v582, %v590
        %v598 = vmul.f32 %v583, %v594
        %v599 = vadd.f32 %v575, %v597
        %v600 = vadd.f32 %v576, %v598
        %601 = vrot.lane.b32.xlu0 %v464, 113
        %v602 = vpop.permute.xlu0 %601
        %603 = vrot.lane.b32.xlu0 %v466, 113
        %v604 = vpop.permute.xlu0 %603
        %vm605 = vcmp.lt.s32.totalorder %v485, 113
        %v606 = vsel %vm605, %v602, %v604
        %v607 = vsel %vm605, %v604, %v602
        %s608 = scalar_lea.vmem [#allocation5], 12
        %v609 = vld [vmem:[%s608] sm:$0x3]
        %v611 = vlaneseq
        %v612 = vshrl.u32 %v611, 7
        %v613 = vsub.s32 0, %v612
        %v614 = vrot.slane %v609, %v613
        %v615 = vlaneseq
        %v616 = vshrl.u32 %v615, 7
        %v617 = vsub.s32 1, %v616
        %v618 = vrot.slane %v609, %v617
        %v621 = vmul.f32 %v606, %v614
        %v622 = vmul.f32 %v607, %v618
        %v623 = vadd.f32 %v599, %v621
        %v624 = vadd.f32 %v600, %v622
        %625 = vrot.lane.b32.xlu0 %v468, 112
        %v626 = vpop.permute.xlu0 %625
        %627 = vrot.lane.b32.xlu0 %v470, 112
        %v628 = vpop.permute.xlu0 %627
        %vm629 = vcmp.lt.s32.totalorder %v485, 112
        %v630 = vsel %vm629, %v626, %v628
        %v631 = vsel %vm629, %v628, %v626
        %s632 = scalar_lea.vmem [#allocation5], 14
        %v633 = vld [vmem:[%s632] sm:$0x3]
        %v635 = vlaneseq
        %v636 = vshrl.u32 %v635, 7
        %v637 = vsub.s32 0, %v636
        %v638 = vrot.slane %v633, %v637
        %v639 = vlaneseq
        %v640 = vshrl.u32 %v639, 7
        %v641 = vsub.s32 1, %v640
        %v642 = vrot.slane %v633, %v641
        %v645 = vmul.f32 %v630, %v638
        %v646 = vmul.f32 %v631, %v642
        %v647 = vadd.f32 %v623, %v645
        %v648 = vadd.f32 %v624, %v646
        %649 = vrot.lane.b32.xlu0 %v474, 111
        %v650 = vpop.permute.xlu0 %649
        %651 = vrot.lane.b32.xlu0 %v476, 111
        %v652 = vpop.permute.xlu0 %651
        %vm653 = vcmp.lt.s32.totalorder %v485, 111
        %v654 = vsel %vm653, %v650, %v652
        %v655 = vsel %vm653, %v652, %v650
        %s656 = scalar_lea.vmem [#allocation5], 16
        %v657 = vld [vmem:[%s656] sm:$0x3]
        %v659 = vlaneseq
        %v660 = vshrl.u32 %v659, 7
        %v661 = vsub.s32 0, %v660
        %v662 = vrot.slane %v657, %v661
        %v663 = vlaneseq
        %v664 = vshrl.u32 %v663, 7
        %v665 = vsub.s32 1, %v664
        %v666 = vrot.slane %v657, %v665
        %v669 = vmul.f32 %v654, %v662
        %v670 = vmul.f32 %v655, %v666
        %v671 = vadd.f32 %v647, %v669
        %v672 = vadd.f32 %v648, %v670
        %v673 = vld [vmem:[#allocation8] sm:$0xff]
        %675 = vset.pattern.permute.xlu0 0
        %676 = vperm.xlu0 %675, %v673
        %v677 = vpop.permute.xlu0 %676
        %v679 = vadd.f32 %v671, %v677
        %v680 = vadd.f32 %v672, %v677
        %v681 = vadd.f32 %v679, %v680
        %682 = vadd.xlane.f32.xlu0 %v681
        %v683 = vpop.xlane.xlu0 %682
        %v684 = vrcp.pop 256.0
        %v685 = vmul.f32 %v683, %v684
        %v686 = vsub.f32 %v679, %v685
        %v687 = vsub.f32 %v680, %v685
        %v688 = vmul.f32 %v686, %v686
        %v689 = vmul.f32 %v687, %v687
        %v690 = vadd.f32 %v688, %v689
        %691 = vadd.xlane.f32.xlu0 %v690
        %v692 = vpop.xlane.xlu0 %691
        %v693 = vmul.f32 %v692, %v684
        %v694 = vadd.f32 %v693, 1e-05
        %v695 = vrsqrt.pop %v694
        %v696 = vmul.f32 %v686, %v695
        %v697 = vmul.f32 %v687, %v695
        %v698 = vmax.f32 %v696, 0.0
        %v699 = vmax.f32 %v697, 0.0
        %v700 = vpack.c.bf16 %v698, %v698
        %v701 = vpack.c.bf16 %v699, %v699
        %v702 = vld [vmem:[#allocation10] sm:$0xf]
        %v703 = vld [vmem:[#allocation10 + $0x4] sm:$0xf]
        %v704 = vld [vmem:[#allocation10 + $0x8] sm:$0xf]
        %v705 = vld [vmem:[#allocation10 + $0xc] sm:$0xf]
        %v706 = vld [vmem:[#allocation10 + $0x10] sm:$0xf]
        %v707 = vld [vmem:[#allocation10 + $0x14] sm:$0xf]
        %v708 = vld [vmem:[#allocation10 + $0x18] sm:$0xf]
        %v709 = vld [vmem:[#allocation10 + $0x1c] sm:$0xf]
        %v710 = vld [vmem:[#allocation10 + $0x20] sm:$0xf]
        %v720 = vunpack.c.l.b16 %v702
        %v721 = vunpack.c.l.b16 %v703
        %v722 = vunpack.c.l.b16 %v704
        %v723 = vunpack.c.l.b16 %v705
        %v724 = vunpack.c.l.b16 %v706
        %v725 = vunpack.c.l.b16 %v707
        %v726 = vunpack.c.l.b16 %v708
        %v727 = vunpack.c.l.b16 %v709
        %v728 = vunpack.c.l.b16 %v710
        %v729 = vpack.c.b16 %v721, %v720
        %v730 = vpack.c.b16 %v723, %v722
        %v731 = vpack.c.b16 %v725, %v724
        %v732 = vpack.c.b16 %v727, %v726
        %v733 = vpack.c.b16 %v728, %v728
        %vm734 = vcmask 64512
        %v736 = vsel %vm734, %v729, 0
        %v739 = vsel %vm734, %v730, 0
        %v742 = vsel %vm734, %v731, 0
        %v745 = vsel %vm734, %v732, 0
        %v748 = vsel %vm734, %v733, 0
        %vm750 = vcmask 1043456
        %v752 = vsel %vm750, %v700, 0
        %v755 = vsel %vm750, %v701, 0
        %757 = vmatprep.subr.bf16.mxu0 %v755
        %758 = vmatpush1.bf16.msra.mxu0 %v752
        %759 = vmatprep.subr.bf16.mxu0 0
        %760 = vmatpush1.bf16.msra.mxu0 0
        %761 = vmatprep.subr.bf16.mxu0 0
        %762 = vmatpush1.bf16.msra.mxu0 0
        %763 = vmatprep.subr.bf16.mxu0 0
        %764 = vmatpush1.bf16.msra.mxu0 0
        %765 = vmatprep.subr.bf16.mxu0 0
        %766 = vmatpush1.bf16.msra.mxu0 0
        %767 = vmatprep.subr.bf16.mxu0 0
        %768 = vmatpush1.bf16.msra.mxu0 0
        %769 = vmatprep.subr.bf16.mxu0 0
        %770 = vmatpush1.bf16.msra.mxu0 0
        %771 = vmatprep.subr.bf16.mxu0 0
        %772 = vmatpush1.bf16.msra.mxu0 0
        %773 = vmatprep.subr.bf16.mxu0 0
        %774 = vmatpush1.bf16.msra.mxu0 0
        %775 = vmatprep.subr.bf16.mxu0 0
        %776 = vmatpush1.bf16.msra.mxu0 0
        %777 = vmatprep.subr.bf16.mxu0 0
        %778 = vmatpush1.bf16.msra.mxu0 0
        %779 = vmatprep.subr.bf16.mxu0 0
        %780 = vmatpush1.bf16.msra.mxu0 0
        %781 = vmatprep.subr.bf16.mxu0 0
        %782 = vmatpush1.bf16.msra.mxu0 0
        %783 = vmatprep.subr.bf16.mxu0 0
        %784 = vmatpush1.bf16.msra.mxu0 0
        %785 = vmatprep.subr.bf16.mxu0 0
        %786 = vmatpush1.bf16.msra.mxu0 0
        %787 = vmatprep.subr.bf16.mxu0 0
        %788 = vmatpush1.bf16.msra.mxu0 0
        %789 = vmatprep.mubr.bf16.mxu0 0
        %790 = vmatmul.mubr.bf16.gmra.mrb[0].mxu0 %v736
        %v791 = vpop.f32.mrb[0].mxu0
        %v792 = vadd.f32 0.0, %v791
        %v793 = vpop.f32.mrb[0].mxu0
        %v794 = vadd.f32 0.0, %v793
        %v795 = vpop.f32.mrb[0].mxu0
        %v796 = vadd.f32 0.0, %v795
        %v797 = vpop.f32.mrb[0].mxu0
        %v798 = vadd.f32 0.0, %v797
        %799 = vmatprep.mubr.bf16.mxu0 0
        %800 = vmatmul.mubr.bf16.gmra.mrb[0].mxu0 %v739
        %v801 = vpop.f32.mrb[0].mxu0
        %v802 = vadd.f32 0.0, %v801
        %v803 = vpop.f32.mrb[0].mxu0
        %v804 = vadd.f32 0.0, %v803
        %v805 = vpop.f32.mrb[0].mxu0
        %v806 = vadd.f32 0.0, %v805
        %v807 = vpop.f32.mrb[0].mxu0
        %v808 = vadd.f32 0.0, %v807
        %809 = vmatprep.mubr.bf16.mxu0 0
        %810 = vmatmul.mubr.bf16.gmra.mrb[0].mxu0 %v742
        %v811 = vpop.f32.mrb[0].mxu0
        %v812 = vadd.f32 0.0, %v811
        %v813 = vpop.f32.mrb[0].mxu0
        %v814 = vadd.f32 0.0, %v813
        %v815 = vpop.f32.mrb[0].mxu0
        %v816 = vadd.f32 0.0, %v815
        %v817 = vpop.f32.mrb[0].mxu0
        %v818 = vadd.f32 0.0, %v817
        %819 = vmatprep.mubr.bf16.mxu0 0
        %820 = vmatmul.mubr.bf16.gmra.mrb[0].mxu0 %v745
        %v821 = vpop.f32.mrb[0].mxu0
        %v822 = vadd.f32 0.0, %v821
        %v823 = vpop.f32.mrb[0].mxu0
        %v824 = vadd.f32 0.0, %v823
        %v825 = vpop.f32.mrb[0].mxu0
        %v826 = vadd.f32 0.0, %v825
        %v827 = vpop.f32.mrb[0].mxu0
        %v828 = vadd.f32 0.0, %v827
        %829 = vmatprep.mubr.bf16.mxu0 0
        %830 = vmatmul.mubr.bf16.gmra.mrb[0].mxu0 %v748
        %v831 = vpop.f32.mrb[0].mxu0
        %v832 = vadd.f32 0.0, %v831
        %v833 = vpop.f32.mrb[0].mxu0
        %v834 = vadd.f32 0.0, %v833
        %v835 = vpop.f32.mrb[0].mxu0
        %v836 = vpop.f32.mrb[0].mxu0
        %837 = vdwg.mxu0
        %838 = vrot.lane.b32.xlu0 %v792, 17
        %v839 = vpop.permute.xlu0 %838
        %840 = vrot.lane.b32.xlu0 %v794, 17
        %v841 = vpop.permute.xlu0 %840
        %v842 = vsel %vm486, %v839, %v841
        %v843 = vsel %vm486, %v841, %v839
        %v844 = vmul.f32 %v843, %v494
        %v845 = vmul.f32 %v842, %v498
        %846 = vrot.lane.b32.xlu0 %v796, 16
        %v847 = vpop.permute.xlu0 %846
        %848 = vrot.lane.b32.xlu0 %v798, 16
        %v849 = vpop.permute.xlu0 %848
        %v850 = vsel %vm507, %v847, %v849
        %v851 = vsel %vm507, %v849, %v847
        %v852 = vmul.f32 %v851, %v516
        %v853 = vmul.f32 %v850, %v520
        %v854 = vadd.f32 %v844, %v852
        %v855 = vadd.f32 %v845, %v853
        %856 = vrot.lane.b32.xlu0 %v802, 15
        %v857 = vpop.permute.xlu0 %856
        %858 = vrot.lane.b32.xlu0 %v804, 15
        %v859 = vpop.permute.xlu0 %858
        %v860 = vsel %vm531, %v857, %v859
        %v861 = vsel %vm531, %v859, %v857
        %v862 = vmul.f32 %v861, %v540
        %v863 = vmul.f32 %v860, %v544
        %v864 = vadd.f32 %v854, %v862
        %v865 = vadd.f32 %v855, %v863
        %866 = vrot.lane.b32.xlu0 %v806, 1
        %v867 = vpop.permute.xlu0 %866
        %868 = vrot.lane.b32.xlu0 %v808, 1
        %v869 = vpop.permute.xlu0 %868
        %v870 = vsel %vm555, %v867, %v869
        %v871 = vsel %vm555, %v869, %v867
        %v872 = vmul.f32 %v871, %v564
        %v873 = vmul.f32 %v870, %v568
        %v874 = vadd.f32 %v864, %v872
        %v875 = vadd.f32 %v865, %v873
        %v876 = vadd.f32 %v874, %v812
        %v877 = vadd.f32 %v875, %v814
        %878 = vrot.lane.b32.xlu0 %v816, 127
        %v879 = vpop.permute.xlu0 %878
        %880 = vrot.lane.b32.xlu0 %v818, 127
        %v881 = vpop.permute.xlu0 %880
        %v882 = vsel %vm581, %v879, %v881
        %v883 = vsel %vm581, %v881, %v879
        %v884 = vmul.f32 %v882, %v590
        %v885 = vmul.f32 %v883, %v594
        %v886 = vadd.f32 %v876, %v884
        %v887 = vadd.f32 %v877, %v885
        %888 = vrot.lane.b32.xlu0 %v822, 113
        %v889 = vpop.permute.xlu0 %888
        %890 = vrot.lane.b32.xlu0 %v824, 113
        %v891 = vpop.permute.xlu0 %890
        %v892 = vsel %vm605, %v889, %v891
        %v893 = vsel %vm605, %v891, %v889
        %v894 = vmul.f32 %v892, %v614
        %v895 = vmul.f32 %v893, %v618
        %v896 = vadd.f32 %v886, %v894
        %v897 = vadd.f32 %v887, %v895
        %898 = vrot.lane.b32.xlu0 %v826, 112
        %v899 = vpop.permute.xlu0 %898
        %900 = vrot.lane.b32.xlu0 %v828, 112
        %v901 = vpop.permute.xlu0 %900
        %v902 = vsel %vm629, %v899, %v901
        %v903 = vsel %vm629, %v901, %v899
        %v904 = vmul.f32 %v902, %v638
        %v905 = vmul.f32 %v903, %v642
        %v906 = vadd.f32 %v896, %v904
        %v907 = vadd.f32 %v897, %v905
        %908 = vrot.lane.b32.xlu0 %v832, 111
        %v909 = vpop.permute.xlu0 %908
        %910 = vrot.lane.b32.xlu0 %v834, 111
        %v911 = vpop.permute.xlu0 %910
        %v912 = vsel %vm653, %v909, %v911
        %v913 = vsel %vm653, %v911, %v909
        %v914 = vmul.f32 %v912, %v662
        %v915 = vmul.f32 %v913, %v666
        %v916 = vadd.f32 %v906, %v914
        %v917 = vadd.f32 %v907, %v915
        %v918 = vld [vmem:[#allocation11] sm:$0xff]
        %920 = vset.pattern.permute.xlu0 0
        %921 = vperm.xlu0 %920, %v918
        %v922 = vpop.permute.xlu0 %921
        %v924 = vadd.f32 %v916, %v922
        %v925 = vadd.f32 %v917, %v922
        %v926 = vadd.f32 %v924, %v925
        %927 = vadd.xlane.f32.xlu0 %v926
        %v928 = vpop.xlane.xlu0 %927
        %v929 = vmul.f32 %v928, %v684
        %v930 = vsub.f32 %v924, %v929
        %v931 = vsub.f32 %v925, %v929
        %v932 = vmul.f32 %v930, %v930
        %v933 = vmul.f32 %v931, %v931
        %v934 = vadd.f32 %v932, %v933
        %935 = vadd.xlane.f32.xlu0 %v934
        %v936 = vpop.xlane.xlu0 %935
        %v937 = vmul.f32 %v936, %v684
        %v938 = vadd.f32 %v937, 1e-05
        %v939 = vrsqrt.pop %v938
        %v940 = vmul.f32 %v930, %v939
        %v941 = vmul.f32 %v931, %v939
        %v942 = vmax.f32 %v940, 0.0
        %v943 = vmax.f32 %v941, 0.0
        %v946 = vcombine.low %v942, %v943
        %v948 = vadd.f32 %v338, %v946
        %949 = vst [vmem:[%s336] sm:$0xff] %v948
        %s950 = sand.u32 %s165, 1
        %s951 = scalar_lea.sflag [#allocation4], %s950
        %s952 = sand.u32 %s165, 1
        %s953 = smul.addr %s952, 8
        %s954 = scalar_lea.vmem [#allocation13], %s953
        // Predicated region
        $region69: #{tpu_custom_call.1} parent=43 // pred_check
          %p955 = pneg %p175
        $region70: #{tpu_custom_call.1} parent=43 // pred_check_branch
          %957 = sbr.rel (%p955) target = $region72
        $region71: #{tpu_custom_call.1} parent=43 // pred_region
          %s959 = ssub.s32 128, 128
          %960 = vsyncadd %s951, %s959
          %s961 = smul.addr %s26, 2
          %s962 = smul.addr %s961, 64
          %s963 = scalar_lea.hbm %s6, %s962
          %s965 = sshll.u32 %s954, 4
          %s966 = int_to_ptr.vmem [resolvable:$true] %s965
          %968 = dma.vmem_to_hbm [thread:$0]  %s966, 128, %s963, %s951
        $region72: #{tpu_custom_call.1} parent=43 // pred_fallthru
          _
      $region44: #{tpu_custom_call.1} parent=5 // pred_fallthru
        _
      %p969 = scmp.le.s32.totalorder 2, %s21
      // Predicated region
      $region73: #{tpu_custom_call.1} parent=5 // pred_check
        %p970 = pneg %p969
      $region74: #{tpu_custom_call.1} parent=5 // pred_check_branch
        %972 = sbr.rel (%p970) target = $region76
      $region75: #{tpu_custom_call.1} parent=5 // pred_region
        %s973 = ssub.s32 %s21, 2
        // Predicated region
        $region77: #{tpu_custom_call.1} parent=75 // pred_check
          %p974 = pneg %p181
        $region78: #{tpu_custom_call.1} parent=75 // pred_check_branch
          %976 = sbr.rel (%p974) target = $region80
        $region79: #{tpu_custom_call.1} parent=75 // pred_region
          %s977 = sand.u32 %s166, 1
          %s978 = scalar_lea.sflag [#allocation4], %s977
          %s979 = sand.u32 %s166, 1
          %s980 = smul.addr %s979, 8
          %s981 = scalar_lea.vmem [#allocation13], %s980
          %982 = dma.done %s978, 128
        $region80: #{tpu_custom_call.1} parent=75 // pred_fallthru
          _
      $region76: #{tpu_custom_call.1} parent=5 // pred_fallthru
        _
    $region6: #{tpu_custom_call.1} parent=1 // loop_footer
      %s25 = sadd.s32 1, %s21
    $region7: #{tpu_custom_call.1} parent=1 // loop_footer_branch
      %20 = sbr.rel target = $region3
    $region8: #{tpu_custom_call.1} parent=1 // loop_exit
      _
    %983 = vsyncpa [#allocation3], 1
    %s984 = scalar_lea.sflag [#allocation3], 1
    %985 = vsyncpa %s984, 1
    %986 = vsyncpa [#allocation6], 1
    %987 = vsyncpa [#allocation9], 1
    %988 = vsyncpa [#allocation12], 1
    %989 = vsyncpa [#allocation4], 1
    %s990 = scalar_lea.sflag [#allocation4], 1
    %991 = vsyncpa %s990, 1

</llo_original>
